<compile_context>
chip_gen: v5e
topology: v5e:2x2
jax: 0.10.0
libtpu: 0.0.40
codegen_flags: <defaults>
</compile_context>

<pallas_src>
import functools

import jax
import jax.numpy as jnp
from jax.experimental import pallas as pl
from jax.experimental.pallas import tpu as pltpu


def critic_kernel(xt_ref, w1_ref, b1_ref, w2_ref, b2_ref, wq_ref, bq_ref,
                  out_ref):
    # xt_ref: (d_in, TB) f32, batch on lanes.
    x = xt_ref[...].astype(jnp.bfloat16)                         # (d_in, TB)

    # fc1: (256, d_in) @ (d_in, TB) -> f32 (256, TB); fused bias+ReLU, then a
    # single bf16 intermediate feeds fc2.
    acc1 = jnp.dot(w1_ref[...], x, preferred_element_type=jnp.float32)
    h1 = jnp.maximum(acc1 + b1_ref[...], 0.0).astype(jnp.bfloat16)

    # fc2: (256, 256) @ (256, TB)
    acc2 = jnp.dot(w2_ref[...], h1, preferred_element_type=jnp.float32)
    h2 = jnp.maximum(acc2 + b2_ref[...], 0.0).astype(jnp.bfloat16)

    # q head: (1, 256) @ (256, TB) -> lane-dense (1, TB) on the (mostly idle)
    # MXU; bq is an SMEM scalar.
    q = jnp.dot(wq_ref[...], h2, preferred_element_type=jnp.float32)
    out_ref[...] = q + bq_ref[0]


@functools.partial(jax.jit, static_argnames=("block_b",))
def critic_forward(s, a, params, block_b=2048):
    """s: (B, state_dim), a: (B, action_dim) -> (B, 1) float32."""
    w1, b1, w2, b2, wq, bq = params
    B = s.shape[0]
    hidden, d_in = w1.shape

    # Batch-on-lanes input: (d_in, B). d_in = 6 is tiny, so this concat +
    # transpose in the wrapper is negligible next to the kernel's HBM traffic.
    xt = jnp.concatenate([s, a], axis=1).T

    if B <= block_b:
        tb = B                                # single (or full) block
    else:
        tb = max((block_b // 128) * 128, 128)  # lane-aligned batch tile
    grid = (pl.cdiv(B, tb),)

    def resident(shape):                      # weights stay in VMEM across grid
        return pl.BlockSpec(shape, lambda i: (0, 0))

    out = pl.pallas_call(
        critic_kernel,
        out_shape=jax.ShapeDtypeStruct((1, B), jnp.float32),
        grid=grid,
        in_specs=[
            pl.BlockSpec((d_in, tb), lambda i: (0, i)),           # x^T
            resident((hidden, d_in)),                             # W1 (bf16)
            resident((hidden, 1)),                                # b1 (f32)
            resident((hidden, hidden)),                           # W2 (bf16)
            resident((hidden, 1)),                                # b2 (f32)
            resident((1, hidden)),                                # Wq (bf16)
            pl.BlockSpec(memory_space=pltpu.MemorySpace.SMEM),    # bq scalar
        ],
        out_specs=pl.BlockSpec((1, tb), lambda i: (0, i)),        # lane-dense
        compiler_params=pltpu.CompilerParams(
            dimension_semantics=("parallel",),
            vmem_limit_bytes=32 * 1024 * 1024,
        ),
    )(xt, w1, b1, w2, b2, wq, bq)
    return out.reshape(B, 1)


def init_params(key, state_dim, action_dim, hidden=256):
    """Deterministic init mirroring Critic.initialization().

    Mirrors the PyTorch code's f = 1/sqrt(weight.size()[0]) (== out_features)
    on purpose. Weights stored in PyTorch (out_features, in_features) layout
    so the kernel's transposed dataflow is W @ x^T; matmul weights are bf16,
    biases f32 ((hidden, 1) columns; bq a scalar).
    """
    k1, k2, k3, k4, k5, k6 = jax.random.split(key, 6)
    f1 = 1.0 / jnp.sqrt(jnp.float32(hidden))
    f2 = 1.0 / jnp.sqrt(jnp.float32(hidden))
    f3 = 0.003

    d_in = state_dim + action_dim
    w1 = jax.random.uniform(k1, (hidden, d_in), jnp.float32, -f1, f1).astype(jnp.bfloat16)
    b1 = jax.random.uniform(k2, (hidden, 1), jnp.float32, -f1, f1)
    w2 = jax.random.uniform(k3, (hidden, hidden), jnp.float32, -f2, f2).astype(jnp.bfloat16)
    b2 = jax.random.uniform(k4, (hidden, 1), jnp.float32, -f2, f2)
    wq = jax.random.uniform(k5, (1, hidden), jnp.float32, -f3, f3).astype(jnp.bfloat16)
    bq = jax.random.uniform(k6, (1,), jnp.float32, -f3, f3)
    return (w1, b1, w2, b2, wq, bq)


def reference_forward(s, a, params, mirror_kernel_numerics=True):
    """Pure-JAX reference.

    mirror_kernel_numerics=True reproduces the kernel's bf16-input / f32-accum
    math (including bf16 h1/h2); False runs the original full-f32 module
    semantics (weights upcast), used with a loose tolerance.
    """
    w1, b1, w2, b2, wq, bq = params
    x = jnp.concatenate([s, a], axis=1)
    if mirror_kernel_numerics:
        xb = x.astype(jnp.bfloat16)
        h1 = jnp.maximum(
            jnp.dot(xb, w1.T, preferred_element_type=jnp.float32) + b1.T, 0.0
        ).astype(jnp.bfloat16)
        h2 = jnp.maximum(
            jnp.dot(h1, w2.T, preferred_element_type=jnp.float32) + b2.T, 0.0
        ).astype(jnp.bfloat16)
        return jnp.dot(h2, wq.T, preferred_element_type=jnp.float32) + bq[0]
    # original (f32) module semantics
    h1 = jax.nn.relu(x @ w1.astype(jnp.float32).T + b1.T)
    h2 = jax.nn.relu(h1 @ w2.astype(jnp.float32).T + b2.T)
    return h2 @ wq.astype(jnp.float32).T + bq[0]


if __name__ == "__main__":
    batch = 8
    state_dim = 4      # e.g. second-order integrator state
    action_dim = 2

    key = jax.random.PRNGKey(0)
    kp, ks, ka = jax.random.split(key, 3)
    params = init_params(kp, state_dim, action_dim)
    s = jax.random.normal(ks, (batch, state_dim), jnp.float32)
    a = jax.random.normal(ka, (batch, action_dim), jnp.float32)

    q = jax.block_until_ready(critic_forward(s, a, params))
    assert q.shape == (batch, 1)

    # Tight check against a reference that mirrors the kernel's bf16/f32 math.
    q_mirror = reference_forward(s, a, params, mirror_kernel_numerics=True)
    assert jnp.allclose(q, q_mirror, atol=1e-3, rtol=1e-3), \
        f"mirror mismatch: {jnp.max(jnp.abs(q - q_mirror))}"

    # Loose check against the original full-f32 module semantics (bf16 weights
    # / activations introduce small rounding).
    q_f32 = reference_forward(s, a, params, mirror_kernel_numerics=False)
    assert jnp.allclose(q, q_f32, atol=1e-2, rtol=5e-2), \
        f"f32-reference mismatch: {jnp.max(jnp.abs(q - q_f32))}"

    print("KERNEL_OK")
</pallas_src>

<mosaic_0001>
module attributes {stable_mosaic.version = 11 : i64} {
  func.func @critic_kernel(%arg0: i32, %arg1: memref<6x8xf32, #tpu.memory_space<vmem>>, %arg2: memref<256x6xbf16, #tpu.memory_space<vmem>>, %arg3: memref<256x1xf32, #tpu.memory_space<vmem>>, %arg4: memref<256x256xbf16, #tpu.memory_space<vmem>>, %arg5: memref<256x1xf32, #tpu.memory_space<vmem>>, %arg6: memref<1x256xbf16, #tpu.memory_space<vmem>>, %arg7: memref<1xf32, #tpu.memory_space<smem>>, %arg8: memref<1x8xf32, #tpu.memory_space<vmem>>) attributes {dimension_semantics = [#tpu.dimension_semantics<parallel>], iteration_bounds = array<i64: 1>, scalar_prefetch = 0 : i64, scratch_operands = 0 : i64, tpu.core_type = #tpu.core_type<tc>, window_params = [{transform_indices = @transform_0, window_bounds = array<i64: 6, 8>}, {pipeline_mode = #tpu.pipeline_mode<synchronous>, transform_indices = @transform_1, window_bounds = array<i64: 256, 6>}, {pipeline_mode = #tpu.pipeline_mode<synchronous>, transform_indices = @transform_2, window_bounds = array<i64: 256, 1>}, {pipeline_mode = #tpu.pipeline_mode<synchronous>, transform_indices = @transform_3, window_bounds = array<i64: 256, 256>}, {pipeline_mode = #tpu.pipeline_mode<synchronous>, transform_indices = @transform_4, window_bounds = array<i64: 256, 1>}, {pipeline_mode = #tpu.pipeline_mode<synchronous>, transform_indices = @transform_5, window_bounds = array<i64: 1, 256>}, {transform_indices = @transform_6, window_bounds = array<i64: 1>}, {transform_indices = @transform_7, window_bounds = array<i64: 1, 8>}]} {
    %c0 = arith.constant 0 : index
    %c0_0 = arith.constant 0 : index
    %0 = vector.load %arg1[%c0, %c0_0] : memref<6x8xf32, #tpu.memory_space<vmem>>, vector<6x8xf32>
    %1 = arith.truncf %0 : vector<6x8xf32> to vector<6x8xbf16>
    %c0_1 = arith.constant 0 : index
    %c0_2 = arith.constant 0 : index
    %2 = vector.load %arg2[%c0_1, %c0_2] : memref<256x6xbf16, #tpu.memory_space<vmem>>, vector<256x6xbf16>
    %cst = arith.constant dense<0.000000e+00> : vector<256x8xf32>
    %3 = tpu.matmul %2, %1, %cst {dimension_numbers = #tpu.dot_dimension_numbers<[1], [0], [0], [1], [0, 0, 1, 1], [], []>} : vector<256x6xbf16>, vector<6x8xbf16>, vector<256x8xf32> -> vector<256x8xf32>
    %c0_3 = arith.constant 0 : index
    %c0_4 = arith.constant 0 : index
    %4 = vector.load %arg3[%c0_3, %c0_4] : memref<256x1xf32, #tpu.memory_space<vmem>>, vector<256x1xf32>
    %5 = vector.broadcast %4 : vector<256x1xf32> to vector<256x8xf32>
    %6 = arith.addf %3, %5 : vector<256x8xf32>
    %cst_5 = arith.constant 0.000000e+00 : f32
    %7 = vector.broadcast %cst_5 : f32 to vector<256x8xf32>
    %8 = arith.maximumf %6, %7 : vector<256x8xf32>
    %9 = arith.truncf %8 : vector<256x8xf32> to vector<256x8xbf16>
    %c0_6 = arith.constant 0 : index
    %c0_7 = arith.constant 0 : index
    %10 = vector.load %arg4[%c0_6, %c0_7] : memref<256x256xbf16, #tpu.memory_space<vmem>>, vector<256x256xbf16>
    %cst_8 = arith.constant dense<0.000000e+00> : vector<256x8xf32>
    %11 = tpu.matmul %10, %9, %cst_8 {dimension_numbers = #tpu.dot_dimension_numbers<[1], [0], [0], [1], [0, 0, 1, 1], [], []>} : vector<256x256xbf16>, vector<256x8xbf16>, vector<256x8xf32> -> vector<256x8xf32>
    %c0_9 = arith.constant 0 : index
    %c0_10 = arith.constant 0 : index
    %12 = vector.load %arg5[%c0_9, %c0_10] : memref<256x1xf32, #tpu.memory_space<vmem>>, vector<256x1xf32>
    %13 = vector.broadcast %12 : vector<256x1xf32> to vector<256x8xf32>
    %14 = arith.addf %11, %13 : vector<256x8xf32>
    %cst_11 = arith.constant 0.000000e+00 : f32
    %15 = vector.broadcast %cst_11 : f32 to vector<256x8xf32>
    %16 = arith.maximumf %14, %15 : vector<256x8xf32>
    %17 = arith.truncf %16 : vector<256x8xf32> to vector<256x8xbf16>
    %c0_12 = arith.constant 0 : index
    %c0_13 = arith.constant 0 : index
    %18 = vector.load %arg6[%c0_12, %c0_13] : memref<1x256xbf16, #tpu.memory_space<vmem>>, vector<1x256xbf16>
    %cst_14 = arith.constant dense<0.000000e+00> : vector<1x8xf32>
    %19 = tpu.matmul %18, %17, %cst_14 {dimension_numbers = #tpu.dot_dimension_numbers<[1], [0], [0], [1], [0, 0, 1, 1], [], []>} : vector<1x256xbf16>, vector<256x8xbf16>, vector<1x8xf32> -> vector<1x8xf32>
    %c0_15 = arith.constant 0 : index
    %20 = memref.load %arg7[%c0_15] : memref<1xf32, #tpu.memory_space<smem>>
    %21 = vector.broadcast %20 : f32 to vector<1x8xf32>
    %22 = arith.addf %19, %21 : vector<1x8xf32>
    %c0_16 = arith.constant 0 : index
    %c0_17 = arith.constant 0 : index
    %23 = vector.load %arg8[%c0_16, %c0_17] : memref<1x8xf32, #tpu.memory_space<vmem>>, vector<1x8xf32>
    tpu.vector_store %arg8[%c0_16, %c0_17], %22 {strides = array<i32>} : memref<1x8xf32, #tpu.memory_space<vmem>>, vector<1x8xf32>,
    return
  }
  func.func @transform_0(%arg0: i32) -> (i32, i32) {
    %c0_i32 = arith.constant 0 : i32
    %c0_i32_0 = arith.constant 0 : i32
    return %c0_i32, %arg0 : i32, i32
  }
  func.func @transform_1(%arg0: i32) -> (i32, i32) {
    %c0_i32 = arith.constant 0 : i32
    %c0_i32_0 = arith.constant 0 : i32
    %c0_i32_1 = arith.constant 0 : i32
    return %c0_i32, %c0_i32_0 : i32, i32
  }
  func.func @transform_2(%arg0: i32) -> (i32, i32) {
    %c0_i32 = arith.constant 0 : i32
    %c0_i32_0 = arith.constant 0 : i32
    %c0_i32_1 = arith.constant 0 : i32
    return %c0_i32, %c0_i32_0 : i32, i32
  }
  func.func @transform_3(%arg0: i32) -> (i32, i32) {
    %c0_i32 = arith.constant 0 : i32
    %c0_i32_0 = arith.constant 0 : i32
    %c0_i32_1 = arith.constant 0 : i32
    return %c0_i32, %c0_i32_0 : i32, i32
  }
  func.func @transform_4(%arg0: i32) -> (i32, i32) {
    %c0_i32 = arith.constant 0 : i32
    %c0_i32_0 = arith.constant 0 : i32
    %c0_i32_1 = arith.constant 0 : i32
    return %c0_i32, %c0_i32_0 : i32, i32
  }
  func.func @transform_5(%arg0: i32) -> (i32, i32) {
    %c0_i32 = arith.constant 0 : i32
    %c0_i32_0 = arith.constant 0 : i32
    %c0_i32_1 = arith.constant 0 : i32
    return %c0_i32, %c0_i32_0 : i32, i32
  }
  func.func @transform_6(%arg0: i32) -> i32 {
    %c0_i32 = arith.constant 0 : i32
    %c0_i32_0 = arith.constant 0 : i32
    return %c0_i32 : i32
  }
  func.func @transform_7(%arg0: i32) -> (i32, i32) {
    %c0_i32 = arith.constant 0 : i32
    %c0_i32_0 = arith.constant 0 : i32
    return %c0_i32, %arg0 : i32, i32
  }
}

</mosaic_0001>

<llo_original>
// kernel: critic_forward.1
$region0: #{critic_forward.1}
  #allocation0 [shape = 'u32[]', space=smem, size = 0x4, offset = 0x4, fixed_abs, tag = 'smem constant byte address 0x4 - core index']
  #allocation1 [shape = 'u32[72,128]{1,0:T(1,128)}', space=vmem, size = 0x9000, scoped, tag = 'internal scratch']
  #allocation2 [shape = 'f32[1]{0:T(128)S(6)}', space=smem, size = 0x200, scoped, tag = 'scoped memory for critic_forward.1']
  %s0 = inlined_call_operand.vmem [shape: f32[6,8], index: 0, kind: input, shape index: {}]
  %s1 = inlined_call_operand.vmem [shape: bf16[256,6], index: 1, kind: input, shape index: {}]
  %s2 = inlined_call_operand.vmem [shape: f32[256,1], index: 2, kind: input, shape index: {}]
  %s3 = inlined_call_operand.vmem [shape: bf16[256,256], index: 3, kind: input, shape index: {}]
  %s4 = inlined_call_operand.vmem [shape: f32[256,1], index: 4, kind: input, shape index: {}]
  %s5 = inlined_call_operand.vmem [shape: bf16[1,256], index: 5, kind: input, shape index: {}]
  %s6 = inlined_call_operand.<no memory space> [shape: f32[1], index: 6, kind: input, shape index: {}]
  %s7 = inlined_call_operand.hbm [shape: f32[1,8], index: 7, kind: output, shape index: {}]
  %s8 = sld [smem:[#allocation0]]
  $region38: #{critic_forward.1} parent=0
    _
  %s10 = ssub.s32 1, %s8
  %s11 = scalar_select 0, %s10, %s8
  %12 = sst [smem:[#allocation2]] %s6
  $region1: #{critic_forward.1} parent=0
    #allocation3 [shape = 'u8[512]{0}', space=vmem, size = 0x400, scoped, tag = 'output window, operand 0, single buffered']
    #allocation4 [shape = 's32[1]{0}', space=sflag, size = 0x4, scoped, tag = 'scoped memory for critic_forward.1']
    %13 = vsyncpa [#allocation4], 0
    // Predicated region
    $region2: #{critic_forward.1} parent=1 // pred_check
      _
    $region3: #{critic_forward.1} parent=1 // pred_check_branch
      %15 = sbr.rel (0) target = $region5
    $region4: #{critic_forward.1} parent=1 // pred_region
      _
    $region5: #{critic_forward.1} parent=1 // pred_fallthru
      _
    // Predicated region
    $region6: #{critic_forward.1} parent=1 // pred_check
      _
    $region7: #{critic_forward.1} parent=1 // pred_check_branch
      %17 = sbr.rel (0) target = $region9
    $region8: #{critic_forward.1} parent=1 // pred_region
      _
    $region9: #{critic_forward.1} parent=1 // pred_fallthru
      _
    // Predicated region
    $region10: #{critic_forward.1} parent=1 // pred_check
      _
    $region11: #{critic_forward.1} parent=1 // pred_check_branch
      %19 = sbr.rel (0) target = $region13
    $region12: #{critic_forward.1} parent=1 // pred_region
      _
    $region13: #{critic_forward.1} parent=1 // pred_fallthru
      _
    // Predicated region
    $region14: #{critic_forward.1} parent=1 // pred_check
      _
    $region15: #{critic_forward.1} parent=1 // pred_check_branch
      %21 = sbr.rel (0) target = $region17
    $region16: #{critic_forward.1} parent=1 // pred_region
      _
    $region17: #{critic_forward.1} parent=1 // pred_fallthru
      _
    // Predicated region
    $region18: #{critic_forward.1} parent=1 // pred_check
      _
    $region19: #{critic_forward.1} parent=1 // pred_check_branch
      %23 = sbr.rel (0) target = $region21
    $region20: #{critic_forward.1} parent=1 // pred_region
      _
    $region21: #{critic_forward.1} parent=1 // pred_fallthru
      _
    // Predicated region
    $region22: #{critic_forward.1} parent=1 // pred_check
      _
    $region23: #{critic_forward.1} parent=1 // pred_check_branch
      %25 = sbr.rel (0) target = $region25
    $region24: #{critic_forward.1} parent=1 // pred_region
      _
    $region25: #{critic_forward.1} parent=1 // pred_fallthru
      _
    // Predicated region
    $region26: #{critic_forward.1} parent=1 // pred_check
      _
    $region27: #{critic_forward.1} parent=1 // pred_check_branch
      %27 = sbr.rel (0) target = $region29
    $region28: #{critic_forward.1} parent=1 // pred_region
      _
    $region29: #{critic_forward.1} parent=1 // pred_fallthru
      _
    %v29 = vld [vmem:[%s0] sm:$0x3f]
    %v30 = vpack.c.bf16 %v29, %v29
    %v31 = vld [vmem:[%s1] sm:$0xf]
    %v32 = vld [vmem:[%s1 + $0x4] sm:$0xf]
    %v33 = vld [vmem:[%s1 + $0x8] sm:$0xf]
    %v34 = vld [vmem:[%s1 + $0xc] sm:$0xf]
    %v35 = vld [vmem:[%s1 + $0x10] sm:$0xf]
    %v36 = vld [vmem:[%s1 + $0x14] sm:$0xf]
    %v37 = vld [vmem:[%s1 + $0x18] sm:$0xf]
    %v38 = vld [vmem:[%s1 + $0x1c] sm:$0xf]
    %v39 = vld [vmem:[%s1 + $0x20] sm:$0xf]
    %v40 = vld [vmem:[%s1 + $0x24] sm:$0xf]
    %v41 = vld [vmem:[%s1 + $0x28] sm:$0xf]
    %v42 = vld [vmem:[%s1 + $0x2c] sm:$0xf]
    %v43 = vld [vmem:[%s1 + $0x30] sm:$0xf]
    %v44 = vld [vmem:[%s1 + $0x34] sm:$0xf]
    %v45 = vld [vmem:[%s1 + $0x38] sm:$0xf]
    %v46 = vld [vmem:[%s1 + $0x3c] sm:$0xf]
    %v47 = vld [vmem:[%s1 + $0x40] sm:$0xf]
    %v48 = vld [vmem:[%s1 + $0x44] sm:$0xf]
    %v49 = vld [vmem:[%s1 + $0x48] sm:$0xf]
    %v50 = vld [vmem:[%s1 + $0x4c] sm:$0xf]
    %v51 = vld [vmem:[%s1 + $0x50] sm:$0xf]
    %v52 = vld [vmem:[%s1 + $0x54] sm:$0xf]
    %v53 = vld [vmem:[%s1 + $0x58] sm:$0xf]
    %v54 = vld [vmem:[%s1 + $0x5c] sm:$0xf]
    %v55 = vld [vmem:[%s1 + $0x60] sm:$0xf]
    %v56 = vld [vmem:[%s1 + $0x64] sm:$0xf]
    %v57 = vld [vmem:[%s1 + $0x68] sm:$0xf]
    %v58 = vld [vmem:[%s1 + $0x6c] sm:$0xf]
    %v59 = vld [vmem:[%s1 + $0x70] sm:$0xf]
    %v60 = vld [vmem:[%s1 + $0x74] sm:$0xf]
    %v61 = vld [vmem:[%s1 + $0x78] sm:$0xf]
    %v62 = vld [vmem:[%s1 + $0x7c] sm:$0xf]
    %v63 = vld [vmem:[%s2] sm:$0xff]
    %v64 = vld [vmem:[%s2 + $0x8] sm:$0xff]
    %v65 = vld [vmem:[%s2 + $0x10] sm:$0xff]
    %v66 = vld [vmem:[%s2 + $0x18] sm:$0xff]
    %v67 = vld [vmem:[%s2 + $0x20] sm:$0xff]
    %v68 = vld [vmem:[%s2 + $0x28] sm:$0xff]
    %v69 = vld [vmem:[%s2 + $0x30] sm:$0xff]
    %v70 = vld [vmem:[%s2 + $0x38] sm:$0xff]
    %v71 = vld [vmem:[%s2 + $0x40] sm:$0xff]
    %v72 = vld [vmem:[%s2 + $0x48] sm:$0xff]
    %v73 = vld [vmem:[%s2 + $0x50] sm:$0xff]
    %v74 = vld [vmem:[%s2 + $0x58] sm:$0xff]
    %v75 = vld [vmem:[%s2 + $0x60] sm:$0xff]
    %v76 = vld [vmem:[%s2 + $0x68] sm:$0xff]
    %v77 = vld [vmem:[%s2 + $0x70] sm:$0xff]
    %v78 = vld [vmem:[%s2 + $0x78] sm:$0xff]
    %v79 = vld [vmem:[%s2 + $0x80] sm:$0xff]
    %v80 = vld [vmem:[%s2 + $0x88] sm:$0xff]
    %v81 = vld [vmem:[%s2 + $0x90] sm:$0xff]
    %v82 = vld [vmem:[%s2 + $0x98] sm:$0xff]
    %v83 = vld [vmem:[%s2 + $0xa0] sm:$0xff]
    %v84 = vld [vmem:[%s2 + $0xa8] sm:$0xff]
    %v85 = vld [vmem:[%s2 + $0xb0] sm:$0xff]
    %v86 = vld [vmem:[%s2 + $0xb8] sm:$0xff]
    %v87 = vld [vmem:[%s2 + $0xc0] sm:$0xff]
    %v88 = vld [vmem:[%s2 + $0xc8] sm:$0xff]
    %v89 = vld [vmem:[%s2 + $0xd0] sm:$0xff]
    %v90 = vld [vmem:[%s2 + $0xd8] sm:$0xff]
    %v91 = vld [vmem:[%s2 + $0xe0] sm:$0xff]
    %v92 = vld [vmem:[%s2 + $0xe8] sm:$0xff]
    %v93 = vld [vmem:[%s2 + $0xf0] sm:$0xff]
    %v94 = vld [vmem:[%s2 + $0xf8] sm:$0xff]
    %96 = vset.pattern.permute.xlu0 0
    %97 = vperm.xlu0 %96, %v63
    %v98 = vpop.permute.xlu0 %97
    %101 = vset.pattern.permute.xlu0 0
    %102 = vperm.xlu0 %101, %v64
    %v103 = vpop.permute.xlu0 %102
    %106 = vset.pattern.permute.xlu0 0
    %107 = vperm.xlu0 %106, %v65
    %v108 = vpop.permute.xlu0 %107
    %111 = vset.pattern.permute.xlu0 0
    %112 = vperm.xlu0 %111, %v66
    %v113 = vpop.permute.xlu0 %112
    %116 = vset.pattern.permute.xlu0 0
    %117 = vperm.xlu0 %116, %v67
    %v118 = vpop.permute.xlu0 %117
    %121 = vset.pattern.permute.xlu0 0
    %122 = vperm.xlu0 %121, %v68
    %v123 = vpop.permute.xlu0 %122
    %126 = vset.pattern.permute.xlu0 0
    %127 = vperm.xlu0 %126, %v69
    %v128 = vpop.permute.xlu0 %127
    %131 = vset.pattern.permute.xlu0 0
    %132 = vperm.xlu0 %131, %v70
    %v133 = vpop.permute.xlu0 %132
    %136 = vset.pattern.permute.xlu0 0
    %137 = vperm.xlu0 %136, %v71
    %v138 = vpop.permute.xlu0 %137
    %141 = vset.pattern.permute.xlu0 0
    %142 = vperm.xlu0 %141, %v72
    %v143 = vpop.permute.xlu0 %142
    %146 = vset.pattern.permute.xlu0 0
    %147 = vperm.xlu0 %146, %v73
    %v148 = vpop.permute.xlu0 %147
    %151 = vset.pattern.permute.xlu0 0
    %152 = vperm.xlu0 %151, %v74
    %v153 = vpop.permute.xlu0 %152
    %156 = vset.pattern.permute.xlu0 0
    %157 = vperm.xlu0 %156, %v75
    %v158 = vpop.permute.xlu0 %157
    %161 = vset.pattern.permute.xlu0 0
    %162 = vperm.xlu0 %161, %v76
    %v163 = vpop.permute.xlu0 %162
    %166 = vset.pattern.permute.xlu0 0
    %167 = vperm.xlu0 %166, %v77
    %v168 = vpop.permute.xlu0 %167
    %171 = vset.pattern.permute.xlu0 0
    %172 = vperm.xlu0 %171, %v78
    %v173 = vpop.permute.xlu0 %172
    %176 = vset.pattern.permute.xlu0 0
    %177 = vperm.xlu0 %176, %v79
    %v178 = vpop.permute.xlu0 %177
    %181 = vset.pattern.permute.xlu0 0
    %182 = vperm.xlu0 %181, %v80
    %v183 = vpop.permute.xlu0 %182
    %186 = vset.pattern.permute.xlu0 0
    %187 = vperm.xlu0 %186, %v81
    %v188 = vpop.permute.xlu0 %187
    %191 = vset.pattern.permute.xlu0 0
    %192 = vperm.xlu0 %191, %v82
    %v193 = vpop.permute.xlu0 %192
    %196 = vset.pattern.permute.xlu0 0
    %197 = vperm.xlu0 %196, %v83
    %v198 = vpop.permute.xlu0 %197
    %201 = vset.pattern.permute.xlu0 0
    %202 = vperm.xlu0 %201, %v84
    %v203 = vpop.permute.xlu0 %202
    %206 = vset.pattern.permute.xlu0 0
    %207 = vperm.xlu0 %206, %v85
    %v208 = vpop.permute.xlu0 %207
    %211 = vset.pattern.permute.xlu0 0
    %212 = vperm.xlu0 %211, %v86
    %v213 = vpop.permute.xlu0 %212
    %216 = vset.pattern.permute.xlu0 0
    %217 = vperm.xlu0 %216, %v87
    %v218 = vpop.permute.xlu0 %217
    %221 = vset.pattern.permute.xlu0 0
    %222 = vperm.xlu0 %221, %v88
    %v223 = vpop.permute.xlu0 %222
    %226 = vset.pattern.permute.xlu0 0
    %227 = vperm.xlu0 %226, %v89
    %v228 = vpop.permute.xlu0 %227
    %231 = vset.pattern.permute.xlu0 0
    %232 = vperm.xlu0 %231, %v90
    %v233 = vpop.permute.xlu0 %232
    %236 = vset.pattern.permute.xlu0 0
    %237 = vperm.xlu0 %236, %v91
    %v238 = vpop.permute.xlu0 %237
    %241 = vset.pattern.permute.xlu0 0
    %242 = vperm.xlu0 %241, %v92
    %v243 = vpop.permute.xlu0 %242
    %246 = vset.pattern.permute.xlu0 0
    %247 = vperm.xlu0 %246, %v93
    %v248 = vpop.permute.xlu0 %247
    %251 = vset.pattern.permute.xlu0 0
    %252 = vperm.xlu0 %251, %v94
    %v253 = vpop.permute.xlu0 %252
    %v287 = vunpack.c.l.b16 %v31
    %v288 = vunpack.c.l.b16 %v32
    %v289 = vunpack.c.l.b16 %v33
    %v290 = vunpack.c.l.b16 %v34
    %v291 = vunpack.c.l.b16 %v35
    %v292 = vunpack.c.l.b16 %v36
    %v293 = vunpack.c.l.b16 %v37
    %v294 = vunpack.c.l.b16 %v38
    %v295 = vunpack.c.l.b16 %v39
    %v296 = vunpack.c.l.b16 %v40
    %v297 = vunpack.c.l.b16 %v41
    %v298 = vunpack.c.l.b16 %v42
    %v299 = vunpack.c.l.b16 %v43
    %v300 = vunpack.c.l.b16 %v44
    %v301 = vunpack.c.l.b16 %v45
    %v302 = vunpack.c.l.b16 %v46
    %v303 = vunpack.c.l.b16 %v47
    %v304 = vunpack.c.l.b16 %v48
    %v305 = vunpack.c.l.b16 %v49
    %v306 = vunpack.c.l.b16 %v50
    %v307 = vunpack.c.l.b16 %v51
    %v308 = vunpack.c.l.b16 %v52
    %v309 = vunpack.c.l.b16 %v53
    %v310 = vunpack.c.l.b16 %v54
    %v311 = vunpack.c.l.b16 %v55
    %v312 = vunpack.c.l.b16 %v56
    %v313 = vunpack.c.l.b16 %v57
    %v314 = vunpack.c.l.b16 %v58
    %v315 = vunpack.c.l.b16 %v59
    %v316 = vunpack.c.l.b16 %v60
    %v317 = vunpack.c.l.b16 %v61
    %v318 = vunpack.c.l.b16 %v62
    %v319 = vpack.c.b16 %v288, %v287
    %v320 = vpack.c.b16 %v290, %v289
    %v321 = vpack.c.b16 %v292, %v291
    %v322 = vpack.c.b16 %v294, %v293
    %v323 = vpack.c.b16 %v296, %v295
    %v324 = vpack.c.b16 %v298, %v297
    %v325 = vpack.c.b16 %v300, %v299
    %v326 = vpack.c.b16 %v302, %v301
    %v327 = vpack.c.b16 %v304, %v303
    %v328 = vpack.c.b16 %v306, %v305
    %v329 = vpack.c.b16 %v308, %v307
    %v330 = vpack.c.b16 %v310, %v309
    %v331 = vpack.c.b16 %v312, %v311
    %v332 = vpack.c.b16 %v314, %v313
    %v333 = vpack.c.b16 %v316, %v315
    %v334 = vpack.c.b16 %v318, %v317
    %vm335 = vcmask 48128
    %v337 = vsel %vm335, %v319, 0
    %v340 = vsel %vm335, %v320, 0
    %v343 = vsel %vm335, %v321, 0
    %v346 = vsel %vm335, %v322, 0
    %v349 = vsel %vm335, %v323, 0
    %v352 = vsel %vm335, %v324, 0
    %v355 = vsel %vm335, %v325, 0
    %v358 = vsel %vm335, %v326, 0
    %v361 = vsel %vm335, %v327, 0
    %v364 = vsel %vm335, %v328, 0
    %v367 = vsel %vm335, %v329, 0
    %v370 = vsel %vm335, %v330, 0
    %v373 = vsel %vm335, %v331, 0
    %v376 = vsel %vm335, %v332, 0
    %v379 = vsel %vm335, %v333, 0
    %v382 = vsel %vm335, %v334, 0
    %vm384 = vcmask 1042432
    %v386 = vsel %vm384, %v30, 0
    %388 = vmatpush.bf16.msra.mxu0 0
    %389 = vmatpush.bf16.msra.mxu0 0
    %390 = vmatpush.bf16.msra.mxu0 0
    %391 = vmatpush.bf16.msra.mxu0 0
    %392 = vmatpush.bf16.msra.mxu0 0
    %393 = vmatpush.bf16.msra.mxu0 0
    %394 = vmatpush.bf16.msra.mxu0 0
    %395 = vmatpush.bf16.msra.mxu0 %v386
    %396 = vmatmul.bf16.gmra.mxu0 %v337
    %v397 = vpop.f32.mrf.mxu0
    %v398 = vadd.f32 %v98, %v397
    %v399 = vpop.f32.mrf.mxu0
    %v400 = vadd.f32 %v103, %v399
    %401 = vmatmul.bf16.gmra.mxu0 %v340
    %v402 = vpop.f32.mrf.mxu0
    %v403 = vadd.f32 %v108, %v402
    %v404 = vpop.f32.mrf.mxu0
    %v405 = vadd.f32 %v113, %v404
    %406 = vmatmul.bf16.gmra.mxu0 %v343
    %v407 = vpop.f32.mrf.mxu0
    %v408 = vadd.f32 %v118, %v407
    %v409 = vpop.f32.mrf.mxu0
    %v410 = vadd.f32 %v123, %v409
    %411 = vmatmul.bf16.gmra.mxu0 %v346
    %v412 = vpop.f32.mrf.mxu0
    %v413 = vadd.f32 %v128, %v412
    %v414 = vpop.f32.mrf.mxu0
    %v415 = vadd.f32 %v133, %v414
    %416 = vmatmul.bf16.gmra.mxu0 %v349
    %v417 = vpop.f32.mrf.mxu0
    %v418 = vadd.f32 %v138, %v417
    %v419 = vpop.f32.mrf.mxu0
    %v420 = vadd.f32 %v143, %v419
    %421 = vmatmul.bf16.gmra.mxu0 %v352
    %v422 = vpop.f32.mrf.mxu0
    %v423 = vadd.f32 %v148, %v422
    %v424 = vpop.f32.mrf.mxu0
    %v425 = vadd.f32 %v153, %v424
    %426 = vmatmul.bf16.gmra.mxu0 %v355
    %v427 = vpop.f32.mrf.mxu0
    %v428 = vadd.f32 %v158, %v427
    %v429 = vpop.f32.mrf.mxu0
    %v430 = vadd.f32 %v163, %v429
    %431 = vmatmul.bf16.gmra.mxu0 %v358
    %v432 = vpop.f32.mrf.mxu0
    %v433 = vadd.f32 %v168, %v432
    %v434 = vpop.f32.mrf.mxu0
    %v435 = vadd.f32 %v173, %v434
    %436 = vmatmul.bf16.gmra.mxu0 %v361
    %v437 = vpop.f32.mrf.mxu0
    %v438 = vadd.f32 %v178, %v437
    %v439 = vpop.f32.mrf.mxu0
    %v440 = vadd.f32 %v183, %v439
    %441 = vmatmul.bf16.gmra.mxu0 %v364
    %v442 = vpop.f32.mrf.mxu0
    %v443 = vadd.f32 %v188, %v442
    %v444 = vpop.f32.mrf.mxu0
    %v445 = vadd.f32 %v193, %v444
    %446 = vmatmul.bf16.gmra.mxu0 %v367
    %v447 = vpop.f32.mrf.mxu0
    %v448 = vadd.f32 %v198, %v447
    %v449 = vpop.f32.mrf.mxu0
    %v450 = vadd.f32 %v203, %v449
    %451 = vmatmul.bf16.gmra.mxu0 %v370
    %v452 = vpop.f32.mrf.mxu0
    %v453 = vadd.f32 %v208, %v452
    %v454 = vpop.f32.mrf.mxu0
    %v455 = vadd.f32 %v213, %v454
    %456 = vmatmul.bf16.gmra.mxu0 %v373
    %v457 = vpop.f32.mrf.mxu0
    %v458 = vadd.f32 %v218, %v457
    %v459 = vpop.f32.mrf.mxu0
    %v460 = vadd.f32 %v223, %v459
    %461 = vmatmul.bf16.gmra.mxu0 %v376
    %v462 = vpop.f32.mrf.mxu0
    %v463 = vadd.f32 %v228, %v462
    %v464 = vpop.f32.mrf.mxu0
    %v465 = vadd.f32 %v233, %v464
    %466 = vmatmul.bf16.gmra.mxu0 %v379
    %v467 = vpop.f32.mrf.mxu0
    %v468 = vadd.f32 %v238, %v467
    %v469 = vpop.f32.mrf.mxu0
    %v470 = vadd.f32 %v243, %v469
    %471 = vmatmul.bf16.gmra.mxu0 %v382
    %v472 = vpop.f32.mrf.mxu0
    %v473 = vadd.f32 %v248, %v472
    %v474 = vpop.f32.mrf.mxu0
    %v475 = vadd.f32 %v253, %v474
    %476 = vdwg.mxu0
    %v477 = vmax.f32 %v398, 0.0
    %v478 = vmax.f32 %v400, 0.0
    %v479 = vmax.f32 %v403, 0.0
    %v480 = vmax.f32 %v405, 0.0
    %v481 = vmax.f32 %v408, 0.0
    %v482 = vmax.f32 %v410, 0.0
    %v483 = vmax.f32 %v413, 0.0
    %v484 = vmax.f32 %v415, 0.0
    %v485 = vmax.f32 %v418, 0.0
    %v486 = vmax.f32 %v420, 0.0
    %v487 = vmax.f32 %v423, 0.0
    %v488 = vmax.f32 %v425, 0.0
    %v489 = vmax.f32 %v428, 0.0
    %v490 = vmax.f32 %v430, 0.0
    %v491 = vmax.f32 %v433, 0.0
    %v492 = vmax.f32 %v435, 0.0
    %v493 = vmax.f32 %v438, 0.0
    %v494 = vmax.f32 %v440, 0.0
    %v495 = vmax.f32 %v443, 0.0
    %v496 = vmax.f32 %v445, 0.0
    %v497 = vmax.f32 %v448, 0.0
    %v498 = vmax.f32 %v450, 0.0
    %v499 = vmax.f32 %v453, 0.0
    %v500 = vmax.f32 %v455, 0.0
    %v501 = vmax.f32 %v458, 0.0
    %v502 = vmax.f32 %v460, 0.0
    %v503 = vmax.f32 %v463, 0.0
    %v504 = vmax.f32 %v465, 0.0
    %v505 = vmax.f32 %v468, 0.0
    %v506 = vmax.f32 %v470, 0.0
    %v507 = vmax.f32 %v473, 0.0
    %v508 = vmax.f32 %v475, 0.0
    %v509 = vpack.c.bf16 %v478, %v477
    %v510 = vpack.c.bf16 %v480, %v479
    %v511 = vpack.c.bf16 %v482, %v481
    %v512 = vpack.c.bf16 %v484, %v483
    %v513 = vpack.c.bf16 %v486, %v485
    %v514 = vpack.c.bf16 %v488, %v487
    %v515 = vpack.c.bf16 %v490, %v489
    %v516 = vpack.c.bf16 %v492, %v491
    %v517 = vpack.c.bf16 %v494, %v493
    %v518 = vpack.c.bf16 %v496, %v495
    %v519 = vpack.c.bf16 %v498, %v497
    %v520 = vpack.c.bf16 %v500, %v499
    %v521 = vpack.c.bf16 %v502, %v501
    %v522 = vpack.c.bf16 %v504, %v503
    %v523 = vpack.c.bf16 %v506, %v505
    %v524 = vpack.c.bf16 %v508, %v507
    %v525 = vld [vmem:[%s3] sm:$0xff]
    %v526 = vld [vmem:[%s3 + $0x8] sm:$0xff]
    %v527 = vld [vmem:[%s3 + $0x10] sm:$0xff]
    %v528 = vld [vmem:[%s3 + $0x18] sm:$0xff]
    %v529 = vld [vmem:[%s3 + $0x20] sm:$0xff]
    %v530 = vld [vmem:[%s3 + $0x28] sm:$0xff]
    %v531 = vld [vmem:[%s3 + $0x30] sm:$0xff]
    %v532 = vld [vmem:[%s3 + $0x38] sm:$0xff]
    %v533 = vld [vmem:[%s3 + $0x40] sm:$0xff]
    %v534 = vld [vmem:[%s3 + $0x48] sm:$0xff]
    %v535 = vld [vmem:[%s3 + $0x50] sm:$0xff]
    %v536 = vld [vmem:[%s3 + $0x58] sm:$0xff]
    %v537 = vld [vmem:[%s3 + $0x60] sm:$0xff]
    %v538 = vld [vmem:[%s3 + $0x68] sm:$0xff]
    %v539 = vld [vmem:[%s3 + $0x70] sm:$0xff]
    %v540 = vld [vmem:[%s3 + $0x78] sm:$0xff]
    %v541 = vld [vmem:[%s3 + $0x80] sm:$0xff]
    %v542 = vld [vmem:[%s3 + $0x88] sm:$0xff]
    %v543 = vld [vmem:[%s3 + $0x90] sm:$0xff]
    %v544 = vld [vmem:[%s3 + $0x98] sm:$0xff]
    %v545 = vld [vmem:[%s3 + $0xa0] sm:$0xff]
    %v546 = vld [vmem:[%s3 + $0xa8] sm:$0xff]
    %v547 = vld [vmem:[%s3 + $0xb0] sm:$0xff]
    %v548 = vld [vmem:[%s3 + $0xb8] sm:$0xff]
    %v549 = vld [vmem:[%s3 + $0xc0] sm:$0xff]
    %v550 = vld [vmem:[%s3 + $0xc8] sm:$0xff]
    %v551 = vld [vmem:[%s3 + $0xd0] sm:$0xff]
    %v552 = vld [vmem:[%s3 + $0xd8] sm:$0xff]
    %v553 = vld [vmem:[%s3 + $0xe0] sm:$0xff]
    %v554 = vld [vmem:[%s3 + $0xe8] sm:$0xff]
    %v555 = vld [vmem:[%s3 + $0xf0] sm:$0xff]
    %v556 = vld [vmem:[%s3 + $0xf8] sm:$0xff]
    %v557 = vld [vmem:[%s4] sm:$0xff]
    %v558 = vld [vmem:[%s4 + $0x8] sm:$0xff]
    %v559 = vld [vmem:[%s4 + $0x10] sm:$0xff]
    %v560 = vld [vmem:[%s4 + $0x18] sm:$0xff]
    %v561 = vld [vmem:[%s4 + $0x20] sm:$0xff]
    %v562 = vld [vmem:[%s4 + $0x28] sm:$0xff]
    %v563 = vld [vmem:[%s4 + $0x30] sm:$0xff]
    %v564 = vld [vmem:[%s4 + $0x38] sm:$0xff]
    %v565 = vld [vmem:[%s4 + $0x40] sm:$0xff]
    %v566 = vld [vmem:[%s4 + $0x48] sm:$0xff]
    %v567 = vld [vmem:[%s4 + $0x50] sm:$0xff]
    %v568 = vld [vmem:[%s4 + $0x58] sm:$0xff]
    %v569 = vld [vmem:[%s4 + $0x60] sm:$0xff]
    %v570 = vld [vmem:[%s4 + $0x68] sm:$0xff]
    %v571 = vld [vmem:[%s4 + $0x70] sm:$0xff]
    %v572 = vld [vmem:[%s4 + $0x78] sm:$0xff]
    %v573 = vld [vmem:[%s4 + $0x80] sm:$0xff]
    %v574 = vld [vmem:[%s4 + $0x88] sm:$0xff]
    %v575 = vld [vmem:[%s4 + $0x90] sm:$0xff]
    %v576 = vld [vmem:[%s4 + $0x98] sm:$0xff]
    %v577 = vld [vmem:[%s4 + $0xa0] sm:$0xff]
    %v578 = vld [vmem:[%s4 + $0xa8] sm:$0xff]
    %v579 = vld [vmem:[%s4 + $0xb0] sm:$0xff]
    %v580 = vld [vmem:[%s4 + $0xb8] sm:$0xff]
    %v581 = vld [vmem:[%s4 + $0xc0] sm:$0xff]
    %v582 = vld [vmem:[%s4 + $0xc8] sm:$0xff]
    %v583 = vld [vmem:[%s4 + $0xd0] sm:$0xff]
    %v584 = vld [vmem:[%s4 + $0xd8] sm:$0xff]
    %v585 = vld [vmem:[%s4 + $0xe0] sm:$0xff]
    %v586 = vld [vmem:[%s4 + $0xe8] sm:$0xff]
    %v587 = vld [vmem:[%s4 + $0xf0] sm:$0xff]
    %v588 = vld [vmem:[%s4 + $0xf8] sm:$0xff]
    %590 = vset.pattern.permute.xlu0 0
    %591 = vperm.xlu0 %590, %v557
    %v592 = vpop.permute.xlu0 %591
    %595 = vset.pattern.permute.xlu0 0
    %596 = vperm.xlu0 %595, %v558
    %v597 = vpop.permute.xlu0 %596
    %600 = vset.pattern.permute.xlu0 0
    %601 = vperm.xlu0 %600, %v559
    %v602 = vpop.permute.xlu0 %601
    %605 = vset.pattern.permute.xlu0 0
    %606 = vperm.xlu0 %605, %v560
    %v607 = vpop.permute.xlu0 %606
    %610 = vset.pattern.permute.xlu0 0
    %611 = vperm.xlu0 %610, %v561
    %v612 = vpop.permute.xlu0 %611
    %615 = vset.pattern.permute.xlu0 0
    %616 = vperm.xlu0 %615, %v562
    %v617 = vpop.permute.xlu0 %616
    %620 = vset.pattern.permute.xlu0 0
    %621 = vperm.xlu0 %620, %v563
    %v622 = vpop.permute.xlu0 %621
    %625 = vset.pattern.permute.xlu0 0
    %626 = vperm.xlu0 %625, %v564
    %v627 = vpop.permute.xlu0 %626
    %630 = vset.pattern.permute.xlu0 0
    %631 = vperm.xlu0 %630, %v565
    %v632 = vpop.permute.xlu0 %631
    %635 = vset.pattern.permute.xlu0 0
    %636 = vperm.xlu0 %635, %v566
    %v637 = vpop.permute.xlu0 %636
    %640 = vset.pattern.permute.xlu0 0
    %641 = vperm.xlu0 %640, %v567
    %v642 = vpop.permute.xlu0 %641
    %645 = vset.pattern.permute.xlu0 0
    %646 = vperm.xlu0 %645, %v568
    %v647 = vpop.permute.xlu0 %646
    %650 = vset.pattern.permute.xlu0 0
    %651 = vperm.xlu0 %650, %v569
    %v652 = vpop.permute.xlu0 %651
    %655 = vset.pattern.permute.xlu0 0
    %656 = vperm.xlu0 %655, %v570
    %v657 = vpop.permute.xlu0 %656
    %660 = vset.pattern.permute.xlu0 0
    %661 = vperm.xlu0 %660, %v571
    %v662 = vpop.permute.xlu0 %661
    %665 = vset.pattern.permute.xlu0 0
    %666 = vperm.xlu0 %665, %v572
    %v667 = vpop.permute.xlu0 %666
    %670 = vset.pattern.permute.xlu0 0
    %671 = vperm.xlu0 %670, %v573
    %v672 = vpop.permute.xlu0 %671
    %675 = vset.pattern.permute.xlu0 0
    %676 = vperm.xlu0 %675, %v574
    %v677 = vpop.permute.xlu0 %676
    %680 = vset.pattern.permute.xlu0 0
    %681 = vperm.xlu0 %680, %v575
    %v682 = vpop.permute.xlu0 %681
    %685 = vset.pattern.permute.xlu0 0
    %686 = vperm.xlu0 %685, %v576
    %v687 = vpop.permute.xlu0 %686
    %690 = vset.pattern.permute.xlu0 0
    %691 = vperm.xlu0 %690, %v577
    %v692 = vpop.permute.xlu0 %691
    %695 = vset.pattern.permute.xlu0 0
    %696 = vperm.xlu0 %695, %v578
    %v697 = vpop.permute.xlu0 %696
    %700 = vset.pattern.permute.xlu0 0
    %701 = vperm.xlu0 %700, %v579
    %v702 = vpop.permute.xlu0 %701
    %705 = vset.pattern.permute.xlu0 0
    %706 = vperm.xlu0 %705, %v580
    %v707 = vpop.permute.xlu0 %706
    %710 = vset.pattern.permute.xlu0 0
    %711 = vperm.xlu0 %710, %v581
    %v712 = vpop.permute.xlu0 %711
    %715 = vset.pattern.permute.xlu0 0
    %716 = vperm.xlu0 %715, %v582
    %v717 = vpop.permute.xlu0 %716
    %720 = vset.pattern.permute.xlu0 0
    %721 = vperm.xlu0 %720, %v583
    %v722 = vpop.permute.xlu0 %721
    %725 = vset.pattern.permute.xlu0 0
    %726 = vperm.xlu0 %725, %v584
    %v727 = vpop.permute.xlu0 %726
    %730 = vset.pattern.permute.xlu0 0
    %731 = vperm.xlu0 %730, %v585
    %v732 = vpop.permute.xlu0 %731
    %735 = vset.pattern.permute.xlu0 0
    %736 = vperm.xlu0 %735, %v586
    %v737 = vpop.permute.xlu0 %736
    %740 = vset.pattern.permute.xlu0 0
    %741 = vperm.xlu0 %740, %v587
    %v742 = vpop.permute.xlu0 %741
    %745 = vset.pattern.permute.xlu0 0
    %746 = vperm.xlu0 %745, %v588
    %v747 = vpop.permute.xlu0 %746
    %v781 = vunpack.c.l.b16 %v525
    %v782 = vunpack.c.h.b16 %v525
    %v783 = vunpack.c.l.b16 %v526
    %v784 = vunpack.c.h.b16 %v526
    %v785 = vunpack.c.l.b16 %v527
    %v786 = vunpack.c.h.b16 %v527
    %v787 = vunpack.c.l.b16 %v528
    %v788 = vunpack.c.h.b16 %v528
    %v789 = vunpack.c.l.b16 %v529
    %v790 = vunpack.c.h.b16 %v529
    %v791 = vunpack.c.l.b16 %v530
    %v792 = vunpack.c.h.b16 %v530
    %v793 = vunpack.c.l.b16 %v531
    %v794 = vunpack.c.h.b16 %v531
    %v795 = vunpack.c.l.b16 %v532
    %v796 = vunpack.c.h.b16 %v532
    %v797 = vunpack.c.l.b16 %v533
    %v798 = vunpack.c.h.b16 %v533
    %v799 = vunpack.c.l.b16 %v534
    %v800 = vunpack.c.h.b16 %v534
    %v801 = vunpack.c.l.b16 %v535
    %v802 = vunpack.c.h.b16 %v535
    %v803 = vunpack.c.l.b16 %v536
    %v804 = vunpack.c.h.b16 %v536
    %v805 = vunpack.c.l.b16 %v537
    %v806 = vunpack.c.h.b16 %v537
    %v807 = vunpack.c.l.b16 %v538
    %v808 = vunpack.c.h.b16 %v538
    %v809 = vunpack.c.l.b16 %v539
    %v810 = vunpack.c.h.b16 %v539
    %v811 = vunpack.c.l.b16 %v540
    %v812 = vunpack.c.h.b16 %v540
    %v813 = vunpack.c.l.b16 %v541
    %v814 = vunpack.c.h.b16 %v541
    %v815 = vunpack.c.l.b16 %v542
    %v816 = vunpack.c.h.b16 %v542
    %v817 = vunpack.c.l.b16 %v543
    %v818 = vunpack.c.h.b16 %v543
    %v819 = vunpack.c.l.b16 %v544
    %v820 = vunpack.c.h.b16 %v544
    %v821 = vunpack.c.l.b16 %v545
    %v822 = vunpack.c.h.b16 %v545
    %v823 = vunpack.c.l.b16 %v546
    %v824 = vunpack.c.h.b16 %v546
    %v825 = vunpack.c.l.b16 %v547
    %v826 = vunpack.c.h.b16 %v547
    %v827 = vunpack.c.l.b16 %v548
    %v828 = vunpack.c.h.b16 %v548
    %v829 = vunpack.c.l.b16 %v549
    %v830 = vunpack.c.h.b16 %v549
    %v831 = vunpack.c.l.b16 %v550
    %v832 = vunpack.c.h.b16 %v550
    %v833 = vunpack.c.l.b16 %v551
    %v834 = vunpack.c.h.b16 %v551
    %v835 = vunpack.c.l.b16 %v552
    %v836 = vunpack.c.h.b16 %v552
    %v837 = vunpack.c.l.b16 %v553
    %v838 = vunpack.c.h.b16 %v553
    %v839 = vunpack.c.l.b16 %v554
    %v840 = vunpack.c.h.b16 %v554
    %v841 = vunpack.c.l.b16 %v555
    %v842 = vunpack.c.h.b16 %v555
    %v843 = vunpack.c.l.b16 %v556
    %v844 = vunpack.c.h.b16 %v556
    %v845 = vpack.c.b16 %v783, %v781
    %v846 = vpack.c.b16 %v784, %v782
    %v847 = vpack.c.b16 %v787, %v785
    %v848 = vpack.c.b16 %v788, %v786
    %v849 = vpack.c.b16 %v791, %v789
    %v850 = vpack.c.b16 %v792, %v790
    %v851 = vpack.c.b16 %v795, %v793
    %v852 = vpack.c.b16 %v796, %v794
    %v853 = vpack.c.b16 %v799, %v797
    %v854 = vpack.c.b16 %v800, %v798
    %v855 = vpack.c.b16 %v803, %v801
    %v856 = vpack.c.b16 %v804, %v802
    %v857 = vpack.c.b16 %v807, %v805
    %v858 = vpack.c.b16 %v808, %v806
    %v859 = vpack.c.b16 %v811, %v809
    %v860 = vpack.c.b16 %v812, %v810
    %v861 = vpack.c.b16 %v815, %v813
    %v862 = vpack.c.b16 %v816, %v814
    %v863 = vpack.c.b16 %v819, %v817
    %v864 = vpack.c.b16 %v820, %v818
    %v865 = vpack.c.b16 %v823, %v821
    %v866 = vpack.c.b16 %v824, %v822
    %v867 = vpack.c.b16 %v827, %v825
    %v868 = vpack.c.b16 %v828, %v826
    %v869 = vpack.c.b16 %v831, %v829
    %v870 = vpack.c.b16 %v832, %v830
    %v871 = vpack.c.b16 %v835, %v833
    %v872 = vpack.c.b16 %v836, %v834
    %v873 = vpack.c.b16 %v839, %v837
    %v874 = vpack.c.b16 %v840, %v838
    %v875 = vpack.c.b16 %v843, %v841
    %v876 = vpack.c.b16 %v844, %v842
    %909 = vmatpush.bf16.msra.mxu0 %v516
    %910 = vmatpush.bf16.msra.mxu0 %v515
    %911 = vmatpush.bf16.msra.mxu0 %v514
    %912 = vmatpush.bf16.msra.mxu0 %v513
    %913 = vmatpush.bf16.msra.mxu0 %v512
    %914 = vmatpush.bf16.msra.mxu0 %v511
    %915 = vmatpush.bf16.msra.mxu0 %v510
    %916 = vmatpush.bf16.msra.mxu0 %v509
    %917 = vmatmul.bf16.gmra.mxu0 %v845
    %v918 = vpop.f32.mrf.mxu0
    %v919 = vadd.f32 %v592, %v918
    %v920 = vpop.f32.mrf.mxu0
    %v921 = vadd.f32 %v597, %v920
    %922 = vmatmul.bf16.gmra.mxu0 %v847
    %v923 = vpop.f32.mrf.mxu0
    %v924 = vadd.f32 %v602, %v923
    %v925 = vpop.f32.mrf.mxu0
    %v926 = vadd.f32 %v607, %v925
    %927 = vmatmul.bf16.gmra.mxu0 %v849
    %v928 = vpop.f32.mrf.mxu0
    %v929 = vadd.f32 %v612, %v928
    %v930 = vpop.f32.mrf.mxu0
    %v931 = vadd.f32 %v617, %v930
    %932 = vmatmul.bf16.gmra.mxu0 %v851
    %v933 = vpop.f32.mrf.mxu0
    %v934 = vadd.f32 %v622, %v933
    %v935 = vpop.f32.mrf.mxu0
    %v936 = vadd.f32 %v627, %v935
    %937 = vmatmul.bf16.gmra.mxu0 %v853
    %v938 = vpop.f32.mrf.mxu0
    %v939 = vadd.f32 %v632, %v938
    %v940 = vpop.f32.mrf.mxu0
    %v941 = vadd.f32 %v637, %v940
    %942 = vmatmul.bf16.gmra.mxu0 %v855
    %v943 = vpop.f32.mrf.mxu0
    %v944 = vadd.f32 %v642, %v943
    %v945 = vpop.f32.mrf.mxu0
    %v946 = vadd.f32 %v647, %v945
    %947 = vmatmul.bf16.gmra.mxu0 %v857
    %v948 = vpop.f32.mrf.mxu0
    %v949 = vadd.f32 %v652, %v948
    %v950 = vpop.f32.mrf.mxu0
    %v951 = vadd.f32 %v657, %v950
    %952 = vmatmul.bf16.gmra.mxu0 %v859
    %v953 = vpop.f32.mrf.mxu0
    %v954 = vadd.f32 %v662, %v953
    %v955 = vpop.f32.mrf.mxu0
    %v956 = vadd.f32 %v667, %v955
    %957 = vmatmul.bf16.gmra.mxu0 %v861
    %v958 = vpop.f32.mrf.mxu0
    %v959 = vadd.f32 %v672, %v958
    %v960 = vpop.f32.mrf.mxu0
    %v961 = vadd.f32 %v677, %v960
    %962 = vmatmul.bf16.gmra.mxu0 %v863
    %v963 = vpop.f32.mrf.mxu0
    %v964 = vadd.f32 %v682, %v963
    %v965 = vpop.f32.mrf.mxu0
    %v966 = vadd.f32 %v687, %v965
    %967 = vmatmul.bf16.gmra.mxu0 %v865
    %v968 = vpop.f32.mrf.mxu0
    %v969 = vadd.f32 %v692, %v968
    %v970 = vpop.f32.mrf.mxu0
    %v971 = vadd.f32 %v697, %v970
    %972 = vmatmul.bf16.gmra.mxu0 %v867
    %v973 = vpop.f32.mrf.mxu0
    %v974 = vadd.f32 %v702, %v973
    %v975 = vpop.f32.mrf.mxu0
    %v976 = vadd.f32 %v707, %v975
    %977 = vmatmul.bf16.gmra.mxu0 %v869
    %v978 = vpop.f32.mrf.mxu0
    %v979 = vadd.f32 %v712, %v978
    %v980 = vpop.f32.mrf.mxu0
    %v981 = vadd.f32 %v717, %v980
    %982 = vmatmul.bf16.gmra.mxu0 %v871
    %v983 = vpop.f32.mrf.mxu0
    %v984 = vadd.f32 %v722, %v983
    %v985 = vpop.f32.mrf.mxu0
    %v986 = vadd.f32 %v727, %v985
    %987 = vmatmul.bf16.gmra.mxu0 %v873
    %v988 = vpop.f32.mrf.mxu0
    %v989 = vadd.f32 %v732, %v988
    %v990 = vpop.f32.mrf.mxu0
    %v991 = vadd.f32 %v737, %v990
    %992 = vmatmul.bf16.gmra.mxu0 %v875
    %v993 = vpop.f32.mrf.mxu0
    %v994 = vadd.f32 %v742, %v993
    %v995 = vpop.f32.mrf.mxu0
    %v996 = vadd.f32 %v747, %v995
    %997 = vdwg.mxu0
    %998 = vmatpush.bf16.msra.mxu0 %v524
    %999 = vmatpush.bf16.msra.mxu0 %v523
    %1000 = vmatpush.bf16.msra.mxu0 %v522
    %1001 = vmatpush.bf16.msra.mxu0 %v521
    %1002 = vmatpush.bf16.msra.mxu0 %v520
    %1003 = vmatpush.bf16.msra.mxu0 %v519
    %1004 = vmatpush.bf16.msra.mxu0 %v518
    %1005 = vmatpush.bf16.msra.mxu0 %v517
    %1006 = vmatmul.bf16.gmra.mxu0 %v846
    %v1007 = vpop.f32.mrf.mxu0
    %v1008 = vadd.f32 %v919, %v1007
    %v1009 = vpop.f32.mrf.mxu0
    %v1010 = vadd.f32 %v921, %v1009
    %1011 = vmatmul.bf16.gmra.mxu0 %v848
    %v1012 = vpop.f32.mrf.mxu0
    %v1013 = vadd.f32 %v924, %v1012
    %v1014 = vpop.f32.mrf.mxu0
    %v1015 = vadd.f32 %v926, %v1014
    %1016 = vmatmul.bf16.gmra.mxu0 %v850
    %v1017 = vpop.f32.mrf.mxu0
    %v1018 = vadd.f32 %v929, %v1017
    %v1019 = vpop.f32.mrf.mxu0
    %v1020 = vadd.f32 %v931, %v1019
    %1021 = vmatmul.bf16.gmra.mxu0 %v852
    %v1022 = vpop.f32.mrf.mxu0
    %v1023 = vadd.f32 %v934, %v1022
    %v1024 = vpop.f32.mrf.mxu0
    %v1025 = vadd.f32 %v936, %v1024
    %1026 = vmatmul.bf16.gmra.mxu0 %v854
    %v1027 = vpop.f32.mrf.mxu0
    %v1028 = vadd.f32 %v939, %v1027
    %v1029 = vpop.f32.mrf.mxu0
    %v1030 = vadd.f32 %v941, %v1029
    %1031 = vmatmul.bf16.gmra.mxu0 %v856
    %v1032 = vpop.f32.mrf.mxu0
    %v1033 = vadd.f32 %v944, %v1032
    %v1034 = vpop.f32.mrf.mxu0
    %v1035 = vadd.f32 %v946, %v1034
    %1036 = vmatmul.bf16.gmra.mxu0 %v858
    %v1037 = vpop.f32.mrf.mxu0
    %v1038 = vadd.f32 %v949, %v1037
    %v1039 = vpop.f32.mrf.mxu0
    %v1040 = vadd.f32 %v951, %v1039
    %1041 = vmatmul.bf16.gmra.mxu0 %v860
    %v1042 = vpop.f32.mrf.mxu0
    %v1043 = vadd.f32 %v954, %v1042
    %v1044 = vpop.f32.mrf.mxu0
    %v1045 = vadd.f32 %v956, %v1044
    %1046 = vmatmul.bf16.gmra.mxu0 %v862
    %v1047 = vpop.f32.mrf.mxu0
    %v1048 = vadd.f32 %v959, %v1047
    %v1049 = vpop.f32.mrf.mxu0
    %v1050 = vadd.f32 %v961, %v1049
    %1051 = vmatmul.bf16.gmra.mxu0 %v864
    %v1052 = vpop.f32.mrf.mxu0
    %v1053 = vadd.f32 %v964, %v1052
    %v1054 = vpop.f32.mrf.mxu0
    %v1055 = vadd.f32 %v966, %v1054
    %1056 = vmatmul.bf16.gmra.mxu0 %v866
    %v1057 = vpop.f32.mrf.mxu0
    %v1058 = vadd.f32 %v969, %v1057
    %v1059 = vpop.f32.mrf.mxu0
    %v1060 = vadd.f32 %v971, %v1059
    %1061 = vmatmul.bf16.gmra.mxu0 %v868
    %v1062 = vpop.f32.mrf.mxu0
    %v1063 = vadd.f32 %v974, %v1062
    %v1064 = vpop.f32.mrf.mxu0
    %v1065 = vadd.f32 %v976, %v1064
    %1066 = vmatmul.bf16.gmra.mxu0 %v870
    %v1067 = vpop.f32.mrf.mxu0
    %v1068 = vadd.f32 %v979, %v1067
    %v1069 = vpop.f32.mrf.mxu0
    %v1070 = vadd.f32 %v981, %v1069
    %1071 = vmatmul.bf16.gmra.mxu0 %v872
    %v1072 = vpop.f32.mrf.mxu0
    %v1073 = vadd.f32 %v984, %v1072
    %v1074 = vpop.f32.mrf.mxu0
    %v1075 = vadd.f32 %v986, %v1074
    %1076 = vmatmul.bf16.gmra.mxu0 %v874
    %v1077 = vpop.f32.mrf.mxu0
    %v1078 = vadd.f32 %v989, %v1077
    %v1079 = vpop.f32.mrf.mxu0
    %v1080 = vadd.f32 %v991, %v1079
    %1081 = vmatmul.bf16.gmra.mxu0 %v876
    %v1082 = vpop.f32.mrf.mxu0
    %v1083 = vadd.f32 %v994, %v1082
    %v1084 = vpop.f32.mrf.mxu0
    %v1085 = vadd.f32 %v996, %v1084
    %1086 = vdwg.mxu0
    %v1087 = vmax.f32 %v1008, 0.0
    %v1088 = vmax.f32 %v1010, 0.0
    %v1089 = vmax.f32 %v1013, 0.0
    %v1090 = vmax.f32 %v1015, 0.0
    %v1091 = vmax.f32 %v1018, 0.0
    %v1092 = vmax.f32 %v1020, 0.0
    %v1093 = vmax.f32 %v1023, 0.0
    %v1094 = vmax.f32 %v1025, 0.0
    %v1095 = vmax.f32 %v1028, 0.0
    %v1096 = vmax.f32 %v1030, 0.0
    %v1097 = vmax.f32 %v1033, 0.0
    %v1098 = vmax.f32 %v1035, 0.0
    %v1099 = vmax.f32 %v1038, 0.0
    %v1100 = vmax.f32 %v1040, 0.0
    %v1101 = vmax.f32 %v1043, 0.0
    %v1102 = vmax.f32 %v1045, 0.0
    %v1103 = vmax.f32 %v1048, 0.0
    %v1104 = vmax.f32 %v1050, 0.0
    %v1105 = vmax.f32 %v1053, 0.0
    %v1106 = vmax.f32 %v1055, 0.0
    %v1107 = vmax.f32 %v1058, 0.0
    %v1108 = vmax.f32 %v1060, 0.0
    %v1109 = vmax.f32 %v1063, 0.0
    %v1110 = vmax.f32 %v1065, 0.0
    %v1111 = vmax.f32 %v1068, 0.0
    %v1112 = vmax.f32 %v1070, 0.0
    %v1113 = vmax.f32 %v1073, 0.0
    %v1114 = vmax.f32 %v1075, 0.0
    %v1115 = vmax.f32 %v1078, 0.0
    %v1116 = vmax.f32 %v1080, 0.0
    %v1117 = vmax.f32 %v1083, 0.0
    %v1118 = vmax.f32 %v1085, 0.0
    %v1119 = vpack.c.bf16 %v1088, %v1087
    %v1120 = vpack.c.bf16 %v1090, %v1089
    %v1121 = vpack.c.bf16 %v1092, %v1091
    %v1122 = vpack.c.bf16 %v1094, %v1093
    %v1123 = vpack.c.bf16 %v1096, %v1095
    %v1124 = vpack.c.bf16 %v1098, %v1097
    %v1125 = vpack.c.bf16 %v1100, %v1099
    %v1126 = vpack.c.bf16 %v1102, %v1101
    %v1127 = vpack.c.bf16 %v1104, %v1103
    %v1128 = vpack.c.bf16 %v1106, %v1105
    %v1129 = vpack.c.bf16 %v1108, %v1107
    %v1130 = vpack.c.bf16 %v1110, %v1109
    %v1131 = vpack.c.bf16 %v1112, %v1111
    %v1132 = vpack.c.bf16 %v1114, %v1113
    %v1133 = vpack.c.bf16 %v1116, %v1115
    %v1134 = vpack.c.bf16 %v1118, %v1117
    %v1135 = vld [vmem:[%s5] sm:$0x3]
    %s1136 = sld [smem:[#allocation2]]
    %v1137 = vstv %s1136
    %1139 = vst [vmem:[#allocation1] ss:$9 sm:$0xff] %v1135
    %v1140 = vld [vmem:[#allocation1] sm:$0xff]
    %v1141 = vld [vmem:[#allocation1 + $0x9] sm:$0xff]
    %1144 = vmatpush.bf16.msra.mxu0 %v1126
    %1145 = vmatpush.bf16.msra.mxu0 %v1125
    %1146 = vmatpush.bf16.msra.mxu0 %v1124
    %1147 = vmatpush.bf16.msra.mxu0 %v1123
    %1148 = vmatpush.bf16.msra.mxu0 %v1122
    %1149 = vmatpush.bf16.msra.mxu0 %v1121
    %1150 = vmatpush.bf16.msra.mxu0 %v1120
    %1151 = vmatpush.bf16.msra.mxu0 %v1119
    %1152 = vmatmul.bf16.gmra.mxu0 %v1140
    %v1153 = vpop.f32.mrf.mxu0
    %v1154 = vadd.f32 %v1137, %v1153
    %v1155 = vpop.f32.mrf.mxu0
    %1156 = vdwg.mxu0
    %1157 = vmatpush.bf16.msra.mxu0 %v1134
    %1158 = vmatpush.bf16.msra.mxu0 %v1133
    %1159 = vmatpush.bf16.msra.mxu0 %v1132
    %1160 = vmatpush.bf16.msra.mxu0 %v1131
    %1161 = vmatpush.bf16.msra.mxu0 %v1130
    %1162 = vmatpush.bf16.msra.mxu0 %v1129
    %1163 = vmatpush.bf16.msra.mxu0 %v1128
    %1164 = vmatpush.bf16.msra.mxu0 %v1127
    %1165 = vmatmul.bf16.gmra.mxu0 %v1141
    %v1166 = vpop.f32.mrf.mxu0
    %v1167 = vadd.f32 %v1154, %v1166
    %v1168 = vpop.f32.mrf.mxu0
    %1169 = vdwg.mxu0
    %vm1170 = vcmask 57344
    %1171 = vst.msk [vmem:[#allocation3] sm:$0x1] %vm1170, %v1167
    // Predicated region
    $region30: #{critic_forward.1} parent=1 // pred_check
      _
    $region31: #{critic_forward.1} parent=1 // pred_check_branch
      %1173 = sbr.rel (0) target = $region33
    $region32: #{critic_forward.1} parent=1 // pred_region
      %1175 = vsyncadd [#allocation4], 0
      %s1177 = sshll.u32 [#allocation3], 4
      %s1178 = int_to_ptr.vmem [resolvable:$true] %s1177
      %s1179 = sshll.u32 %s7, 4
      %s1180 = int_to_ptr.hbm [resolvable:$true] %s1179
      %1182 = dma.vmem_to_hbm [thread:$0]  %s1178, 16, %s1180, [#allocation4]
    $region33: #{critic_forward.1} parent=1 // pred_fallthru
      _
    // Predicated region
    $region34: #{critic_forward.1} parent=1 // pred_check
      _
    $region35: #{critic_forward.1} parent=1 // pred_check_branch
      %1184 = sbr.rel (0) target = $region37
    $region36: #{critic_forward.1} parent=1 // pred_region
      %1186 = dma.done [#allocation4], 16
    $region37: #{critic_forward.1} parent=1 // pred_fallthru
      _
    %1187 = vsyncpa [#allocation4], 1

</llo_original>
